<compile_context>
chip_gen: v7x
topology: tpu7x:2x2x1
jax: 0.10.0
libtpu: 0.0.40
codegen_flags: <defaults>
</compile_context>

<pallas_src>
import functools

import jax
import jax.numpy as jnp
from jax.experimental import pallas as pl
from jax.experimental.pallas import tpu as pltpu

# BlendParams defaults (PyTorch3D): sigma=1e-4, gamma=1e-4, background=(1,1,1)
SIGMA = 1e-4
GAMMA = 1e-4
BG = (1.0, 1.0, 1.0)          # background color; (1,1,1) => delta * bg == delta
ZNEAR = -256.0
ZFAR = 256.0
EPS = 1e-10
INV_SIGMA = 1.0 / SIGMA
INV_GAMMA = 1.0 / GAMMA
INV_ZRANGE = 1.0 / (ZFAR - ZNEAR)
LANES = 128
# Sentinel for masked/padded fragments: sigmoid(-MASKED_DIST/sigma) underflows to
# exactly 0.0 in f32, matching the reference's explicit `* mask`.
MASKED_DIST = 1.0e4


def _clean_shader_kernel(zbuf_ref, dists_ref, bary_ref, fcol_ref, out_ref):
    # zbuf_ref/dists_ref: (K, br, 128) f32   (mask already folded in)
    # bary_ref:           (K, 3, br, 128) bf16
    # fcol_ref:           (K, 3verts, 3rgb, br, 128) bf16
    # out_ref:            (4, br, 128) f32
    K, br, lanes = zbuf_ref.shape

    # Online (flash-style) softmax accumulation over the K faces per pixel.
    m = jnp.full((br, lanes), EPS, jnp.float32)          # running max of z_inv
    s = jnp.zeros((br, lanes), jnp.float32)              # running sum of weights
    wrgb = jnp.zeros((3, br, lanes), jnp.float32)        # running weighted RGB
    alpha_prod = jnp.ones((br, lanes), jnp.float32)      # prod_k (1 - prob_k)

    for k in range(K):                                   # K is small & static
        zbuf_k = zbuf_ref[k]                             # (br, 128)
        dists_k = dists_ref[k]                           # (br, 128)
        bary_k = bary_ref[k].astype(jnp.float32)         # (3, br, 128)
        fcol_k = fcol_ref[k].astype(jnp.float32)         # (3, 3, br, 128)

        # blending.softmax_rgb_blend pieces (mask folded into dists/zbuf upstream).
        prob_k = jax.nn.sigmoid(-dists_k * INV_SIGMA)            # == 0 when masked
        z_inv_k = (ZFAR - zbuf_k) * INV_ZRANGE                   # == 0 when masked

        m_new = jnp.maximum(m, z_inv_k)
        scale = jnp.exp((m - m_new) * INV_GAMMA)                 # rescale old accum
        w_k = prob_k * jnp.exp((z_inv_k - m_new) * INV_GAMMA)

        # meshes.sample_textures: barycentric interpolation of face vertex colors.
        texel_k = jnp.sum(bary_k[:, None, :, :] * fcol_k, axis=0)   # (3, br, 128)

        s = s * scale + w_k
        wrgb = wrgb * scale + w_k[None] * texel_k
        alpha_prod = alpha_prod * (1.0 - prob_k)
        m = m_new

    delta = jnp.maximum(jnp.exp((EPS - m) * INV_GAMMA), EPS)     # (br, 128)
    inv_denom = pl.reciprocal(s + delta, approx=True)            # EUP slot, not VALU
    rgb = (wrgb + delta[None]) * inv_denom[None]                 # background == (1,1,1)

    # Four dense (br, 128) stores; no concatenate copy in VMEM.
    out_ref[0, :, :] = rgb[0]
    out_ref[1, :, :] = rgb[1]
    out_ref[2, :, :] = rgb[2]
    out_ref[3, :, :] = 1.0 - alpha_prod


@functools.partial(jax.jit, static_argnames=("block_rows",))
def clean_shader(pix_to_face, zbuf, dists, bary_coords, face_colors, *, block_rows=256):
    """pix_to_face/zbuf/dists: (N,H,W,K); bary_coords: (N,H,W,K,3);
    face_colors: (F, 3 verts, 3 rgb). Returns (N, H, W, 4) float32."""
    N, H, W, K = pix_to_face.shape
    P = N * H * W

    # ---- tile geometry: pixels -> (rows, 128) lanes, rows tiled in blocks of `br` ----
    R = -(-P // LANES)                       # rows of 128 lanes
    R_min = -(-R // 16) * 16                 # multiple of 16 (safe for bf16 tiling)
    br = max(16, min(block_rows, R_min))
    br -= br % 16
    R_pad = -(-R_min // br) * br
    P_pad = R_pad * LANES

    # Fold the pix_to_face>=0 mask into dists / zbuf so the kernel never reads
    # pix_to_face at all (one less HBM stream, no mask VALU work in-kernel).
    masked = pix_to_face < 0
    dists_m = jnp.where(masked, MASKED_DIST, dists.astype(jnp.float32))
    zbuf_m = jnp.where(masked, ZFAR, zbuf.astype(jnp.float32))

    # Data-dependent face-color gather stays in XLA; cast to bf16 BEFORE the gather
    # so the gathered stream (dominant HBM traffic) is written/moved at half width.
    gathered = face_colors.astype(jnp.bfloat16)[jnp.clip(pix_to_face, 0)]  # (N,H,W,K,3,3)

    def prep(x, pad_value):
        flat = x.reshape((P, K) + x.shape[4:])
        if P_pad != P:
            pad = [(0, P_pad - P)] + [(0, 0)] * (flat.ndim - 1)
            flat = jnp.pad(flat, pad, constant_values=pad_value)
        flat = jnp.transpose(flat, tuple(range(1, flat.ndim)) + (0,))
        return flat.reshape(flat.shape[:-1] + (R_pad, LANES))

    # TODO(synk): an upstream rasterizer emitting fragments directly in this
    # K-leading, lane-last layout (and gathering colors into it) would remove these
    # relayout passes entirely; verify in HLO they lower to one fused copy per stream.
    zbuf_l = prep(zbuf_m, ZFAR)                                   # (K, R_pad, 128) f32
    dists_l = prep(dists_m, MASKED_DIST)                          # (K, R_pad, 128) f32
    bary_l = prep(bary_coords.astype(jnp.bfloat16), 0.0)          # (K, 3, R_pad, 128) bf16
    fcol_l = prep(gathered, 0.0)                                  # (K, 3, 3, R_pad, 128) bf16

    out = pl.pallas_call(
        _clean_shader_kernel,
        out_shape=jax.ShapeDtypeStruct((4, R_pad, LANES), jnp.float32),
        grid_spec=pltpu.PrefetchScalarGridSpec(
            num_scalar_prefetch=0,
            grid=(R_pad // br,),
            in_specs=[
                pl.BlockSpec((K, br, LANES), lambda i: (0, i, 0)),
                pl.BlockSpec((K, br, LANES), lambda i: (0, i, 0)),
                pl.BlockSpec((K, 3, br, LANES), lambda i: (0, 0, i, 0)),
                pl.BlockSpec((K, 3, 3, br, LANES), lambda i: (0, 0, 0, i, 0)),
            ],
            out_specs=pl.BlockSpec((4, br, LANES), lambda i: (0, i, 0)),
        ),
        # Per-step DMA ~4-5 MB at br=256; double-buffered footprint ~9-10 MiB, well
        # under the 32 MiB scoped-VMEM default on v5e/v6e/v7x -> no override needed.
        # "parallel" lets the single row axis shard across v7x's 2 TensorCores.
        compiler_params=pltpu.CompilerParams(dimension_semantics=("parallel",)),
    )(zbuf_l, dists_l, bary_l, fcol_l)

    # Trim padding and return NHWC RGBA. (Consumers accepting channel-first RGBA
    # could skip this transpose; it is small relative to the input streams.)
    return out.reshape(4, P_pad)[:, :P].T.reshape(N, H, W, 4)


def clean_shader_ref(pix_to_face, zbuf, dists, bary_coords, face_colors):
    """Pure-JAX reference mirroring PyTorch3D semantics (NHWK layout, full f32)."""
    mask = (pix_to_face >= 0).astype(jnp.float32)
    gathered = face_colors[jnp.clip(pix_to_face, 0)]
    texels = jnp.sum(bary_coords[..., None] * gathered, axis=-2) * mask[..., None]
    prob_map = jax.nn.sigmoid(-dists / SIGMA) * mask
    alpha = jnp.prod(1.0 - prob_map, axis=-1)
    z_inv = (ZFAR - zbuf) / (ZFAR - ZNEAR) * mask
    z_inv_max = jnp.maximum(jnp.max(z_inv, axis=-1, keepdims=True), EPS)
    weights_num = prob_map * jnp.exp((z_inv - z_inv_max) / GAMMA)
    delta = jnp.maximum(jnp.exp((EPS - z_inv_max) / GAMMA), EPS)
    denom = jnp.sum(weights_num, axis=-1, keepdims=True) + delta
    bg = jnp.array(BG, jnp.float32)
    rgb = (jnp.sum(weights_num[..., None] * texels, axis=-2) + delta * bg) / denom
    return jnp.concatenate([rgb, (1.0 - alpha)[..., None]], axis=-1)


if __name__ == "__main__":
    # TODO(synk): rasterization (producing `fragments`) and the Meshes/TexturesVertex
    # data structures are outside this module's forward; synthetic fragments/textures
    # are used.
    N, H, W, K, F = 2, 16, 16, 4, 32

    key = jax.random.PRNGKey(0)
    k1, k2, k3, k4, k5 = jax.random.split(key, 5)
    pix_to_face = jax.random.randint(k1, (N, H, W, K), -1, F, dtype=jnp.int32)
    zbuf = jax.random.uniform(k2, (N, H, W, K), minval=-100.0, maxval=100.0)
    zbuf = jnp.where(pix_to_face >= 0, zbuf, -1.0).astype(jnp.float32)
    dists = jax.random.uniform(k3, (N, H, W, K), minval=-5e-4, maxval=5e-4,
                               dtype=jnp.float32)
    bary = jax.random.uniform(k4, (N, H, W, K, 3), minval=0.01, maxval=1.0,
                              dtype=jnp.float32)
    bary = bary / jnp.sum(bary, axis=-1, keepdims=True)
    face_colors = jax.random.uniform(k5, (F, 3, 3), dtype=jnp.float32)

    images = jax.block_until_ready(
        clean_shader(pix_to_face, zbuf, dists, bary, face_colors))
    ref = clean_shader_ref(pix_to_face, zbuf, dists, bary, face_colors)

    assert images.shape == (N, H, W, 4)
    # bf16-compressed face colors / barycentrics + EUP approx reciprocal give
    # ~1e-3..1e-2 relative error vs the f32 reference (fine for 8-bit images).
    err = float(jnp.max(jnp.abs(images - ref)))
    assert jnp.allclose(images, ref, rtol=2e-2, atol=2e-2), f"mismatch vs ref: {err}"

    print("KERNEL_OK")
</pallas_src>

<mosaic_0001>
module attributes {stable_mosaic.version = 11 : i64} {
  func.func @_clean_shader_kernel(%arg0: i32, %arg1: memref<4x16x128xf32, #tpu.memory_space<vmem>>, %arg2: memref<4x16x128xf32, #tpu.memory_space<vmem>>, %arg3: memref<4x3x16x128xbf16, #tpu.memory_space<vmem>>, %arg4: memref<4x3x3x16x128xbf16, #tpu.memory_space<vmem>>, %arg5: memref<4x16x128xf32, #tpu.memory_space<vmem>>) attributes {dimension_semantics = [#tpu.dimension_semantics<parallel>], iteration_bounds = array<i64: 1>, scalar_prefetch = 0 : i64, scratch_operands = 0 : i64, tpu.core_type = #tpu.core_type<tc>, window_params = [{transform_indices = @transform_0, window_bounds = array<i64: 4, 16, 128>}, {transform_indices = @transform_1, window_bounds = array<i64: 4, 16, 128>}, {transform_indices = @transform_2, window_bounds = array<i64: 4, 3, 16, 128>}, {transform_indices = @transform_3, window_bounds = array<i64: 4, 3, 3, 16, 128>}, {transform_indices = @transform_4, window_bounds = array<i64: 4, 16, 128>}]} {
    %cst = arith.constant 1.000000e-10 : f32
    %0 = vector.broadcast %cst : f32 to vector<16x128xf32>
    %cst_0 = arith.constant 0.000000e+00 : f32
    %1 = vector.broadcast %cst_0 : f32 to vector<16x128xf32>
    %cst_1 = arith.constant 0.000000e+00 : f32
    %2 = vector.broadcast %cst_1 : f32 to vector<3x16x128xf32>
    %cst_2 = arith.constant 1.000000e+00 : f32
    %3 = vector.broadcast %cst_2 : f32 to vector<16x128xf32>
    %c0 = arith.constant 0 : index
    %c0_3 = arith.constant 0 : index
    %c0_4 = arith.constant 0 : index
    %4 = vector.load %arg1[%c0, %c0_3, %c0_4] : memref<4x16x128xf32, #tpu.memory_space<vmem>>, vector<1x16x128xf32>
    %5 = vector.shape_cast %4 : vector<1x16x128xf32> to vector<16x128xf32>
    %c0_5 = arith.constant 0 : index
    %c0_6 = arith.constant 0 : index
    %c0_7 = arith.constant 0 : index
    %6 = vector.load %arg2[%c0_5, %c0_6, %c0_7] : memref<4x16x128xf32, #tpu.memory_space<vmem>>, vector<1x16x128xf32>
    %7 = vector.shape_cast %6 : vector<1x16x128xf32> to vector<16x128xf32>
    %c0_8 = arith.constant 0 : index
    %c0_9 = arith.constant 0 : index
    %c0_10 = arith.constant 0 : index
    %c0_11 = arith.constant 0 : index
    %8 = vector.load %arg3[%c0_8, %c0_9, %c0_10, %c0_11] : memref<4x3x16x128xbf16, #tpu.memory_space<vmem>>, vector<1x3x16x128xbf16>
    %9 = vector.shape_cast %8 : vector<1x3x16x128xbf16> to vector<3x16x128xbf16>
    %10 = arith.extf %9 : vector<3x16x128xbf16> to vector<3x16x128xf32>
    %c0_12 = arith.constant 0 : index
    %c0_13 = arith.constant 0 : index
    %c0_14 = arith.constant 0 : index
    %c0_15 = arith.constant 0 : index
    %c0_16 = arith.constant 0 : index
    %11 = vector.load %arg4[%c0_12, %c0_13, %c0_14, %c0_15, %c0_16] : memref<4x3x3x16x128xbf16, #tpu.memory_space<vmem>>, vector<1x3x3x16x128xbf16>
    %12 = vector.shape_cast %11 : vector<1x3x3x16x128xbf16> to vector<3x3x16x128xbf16>
    %13 = arith.extf %12 : vector<3x3x16x128xbf16> to vector<3x3x16x128xf32>
    %cst_17 = arith.constant 0.000000e+00 : f32
    %14 = vector.broadcast %cst_17 : f32 to vector<16x128xf32>
    %15 = arith.subf %14, %7 : vector<16x128xf32>
    %cst_18 = arith.constant 1.000000e+04 : f32
    %16 = vector.broadcast %cst_18 : f32 to vector<16x128xf32>
    %17 = arith.mulf %15, %16 : vector<16x128xf32>
    %18 = arith.negf %17 : vector<16x128xf32>
    %19 = math.exp %18 : vector<16x128xf32>
    %cst_19 = arith.constant 1.000000e+00 : f32
    %20 = vector.broadcast %cst_19 : f32 to vector<16x128xf32>
    %21 = arith.addf %20, %19 : vector<16x128xf32>
    %22 = arith.divf %20, %21 : vector<16x128xf32>
    %cst_20 = arith.constant 2.560000e+02 : f32
    %23 = vector.broadcast %cst_20 : f32 to vector<16x128xf32>
    %24 = arith.subf %23, %5 : vector<16x128xf32>
    %cst_21 = arith.constant 0.001953125 : f32
    %25 = vector.broadcast %cst_21 : f32 to vector<16x128xf32>
    %26 = arith.mulf %24, %25 : vector<16x128xf32>
    %27 = arith.maximumf %0, %26 : vector<16x128xf32>
    %28 = arith.subf %0, %27 : vector<16x128xf32>
    %cst_22 = arith.constant 1.000000e+04 : f32
    %29 = vector.broadcast %cst_22 : f32 to vector<16x128xf32>
    %30 = arith.mulf %28, %29 : vector<16x128xf32>
    %31 = math.exp %30 : vector<16x128xf32>
    %32 = arith.subf %26, %27 : vector<16x128xf32>
    %cst_23 = arith.constant 1.000000e+04 : f32
    %33 = vector.broadcast %cst_23 : f32 to vector<16x128xf32>
    %34 = arith.mulf %32, %33 : vector<16x128xf32>
    %35 = math.exp %34 : vector<16x128xf32>
    %36 = arith.mulf %22, %35 : vector<16x128xf32>
    %37 = vector.shape_cast %10 : vector<3x16x128xf32> to vector<3x1x16x128xf32>
    %38 = vector.broadcast %37 : vector<3x1x16x128xf32> to vector<3x3x16x128xf32>
    %39 = arith.mulf %38, %13 : vector<3x3x16x128xf32>
    %cst_24 = arith.constant dense<0.000000e+00> : vector<3x16x128xf32>
    %40 = vector.multi_reduction <add>, %39, %cst_24 [0] : vector<3x3x16x128xf32> to vector<3x16x128xf32>
    %41 = arith.mulf %1, %31 : vector<16x128xf32>
    %42 = arith.addf %41, %36 : vector<16x128xf32>
    %43 = vector.shape_cast %31 : vector<16x128xf32> to vector<1x16x128xf32>
    %44 = vector.broadcast %43 : vector<1x16x128xf32> to vector<3x16x128xf32>
    %45 = arith.mulf %2, %44 : vector<3x16x128xf32>
    %46 = vector.shape_cast %36 : vector<16x128xf32> to vector<1x16x128xf32>
    %47 = vector.broadcast %46 : vector<1x16x128xf32> to vector<3x16x128xf32>
    %48 = arith.mulf %47, %40 : vector<3x16x128xf32>
    %49 = arith.addf %45, %48 : vector<3x16x128xf32>
    %cst_25 = arith.constant 1.000000e+00 : f32
    %50 = vector.broadcast %cst_25 : f32 to vector<16x128xf32>
    %51 = arith.subf %50, %22 : vector<16x128xf32>
    %52 = arith.mulf %3, %51 : vector<16x128xf32>
    %c1 = arith.constant 1 : index
    %c0_26 = arith.constant 0 : index
    %c0_27 = arith.constant 0 : index
    %53 = vector.load %arg1[%c1, %c0_26, %c0_27] : memref<4x16x128xf32, #tpu.memory_space<vmem>>, vector<1x16x128xf32>
    %54 = vector.shape_cast %53 : vector<1x16x128xf32> to vector<16x128xf32>
    %c1_28 = arith.constant 1 : index
    %c0_29 = arith.constant 0 : index
    %c0_30 = arith.constant 0 : index
    %55 = vector.load %arg2[%c1_28, %c0_29, %c0_30] : memref<4x16x128xf32, #tpu.memory_space<vmem>>, vector<1x16x128xf32>
    %56 = vector.shape_cast %55 : vector<1x16x128xf32> to vector<16x128xf32>
    %c1_31 = arith.constant 1 : index
    %c0_32 = arith.constant 0 : index
    %c0_33 = arith.constant 0 : index
    %c0_34 = arith.constant 0 : index
    %57 = vector.load %arg3[%c1_31, %c0_32, %c0_33, %c0_34] : memref<4x3x16x128xbf16, #tpu.memory_space<vmem>>, vector<1x3x16x128xbf16>
    %58 = vector.shape_cast %57 : vector<1x3x16x128xbf16> to vector<3x16x128xbf16>
    %59 = arith.extf %58 : vector<3x16x128xbf16> to vector<3x16x128xf32>
    %c1_35 = arith.constant 1 : index
    %c0_36 = arith.constant 0 : index
    %c0_37 = arith.constant 0 : index
    %c0_38 = arith.constant 0 : index
    %c0_39 = arith.constant 0 : index
    %60 = vector.load %arg4[%c1_35, %c0_36, %c0_37, %c0_38, %c0_39] : memref<4x3x3x16x128xbf16, #tpu.memory_space<vmem>>, vector<1x3x3x16x128xbf16>
    %61 = vector.shape_cast %60 : vector<1x3x3x16x128xbf16> to vector<3x3x16x128xbf16>
    %62 = arith.extf %61 : vector<3x3x16x128xbf16> to vector<3x3x16x128xf32>
    %cst_40 = arith.constant 0.000000e+00 : f32
    %63 = vector.broadcast %cst_40 : f32 to vector<16x128xf32>
    %64 = arith.subf %63, %56 : vector<16x128xf32>
    %cst_41 = arith.constant 1.000000e+04 : f32
    %65 = vector.broadcast %cst_41 : f32 to vector<16x128xf32>
    %66 = arith.mulf %64, %65 : vector<16x128xf32>
    %67 = arith.negf %66 : vector<16x128xf32>
    %68 = math.exp %67 : vector<16x128xf32>
    %cst_42 = arith.constant 1.000000e+00 : f32
    %69 = vector.broadcast %cst_42 : f32 to vector<16x128xf32>
    %70 = arith.addf %69, %68 : vector<16x128xf32>
    %71 = arith.divf %69, %70 : vector<16x128xf32>
    %cst_43 = arith.constant 2.560000e+02 : f32
    %72 = vector.broadcast %cst_43 : f32 to vector<16x128xf32>
    %73 = arith.subf %72, %54 : vector<16x128xf32>
    %cst_44 = arith.constant 0.001953125 : f32
    %74 = vector.broadcast %cst_44 : f32 to vector<16x128xf32>
    %75 = arith.mulf %73, %74 : vector<16x128xf32>
    %76 = arith.maximumf %27, %75 : vector<16x128xf32>
    %77 = arith.subf %27, %76 : vector<16x128xf32>
    %cst_45 = arith.constant 1.000000e+04 : f32
    %78 = vector.broadcast %cst_45 : f32 to vector<16x128xf32>
    %79 = arith.mulf %77, %78 : vector<16x128xf32>
    %80 = math.exp %79 : vector<16x128xf32>
    %81 = arith.subf %75, %76 : vector<16x128xf32>
    %cst_46 = arith.constant 1.000000e+04 : f32
    %82 = vector.broadcast %cst_46 : f32 to vector<16x128xf32>
    %83 = arith.mulf %81, %82 : vector<16x128xf32>
    %84 = math.exp %83 : vector<16x128xf32>
    %85 = arith.mulf %71, %84 : vector<16x128xf32>
    %86 = vector.shape_cast %59 : vector<3x16x128xf32> to vector<3x1x16x128xf32>
    %87 = vector.broadcast %86 : vector<3x1x16x128xf32> to vector<3x3x16x128xf32>
    %88 = arith.mulf %87, %62 : vector<3x3x16x128xf32>
    %cst_47 = arith.constant dense<0.000000e+00> : vector<3x16x128xf32>
    %89 = vector.multi_reduction <add>, %88, %cst_47 [0] : vector<3x3x16x128xf32> to vector<3x16x128xf32>
    %90 = arith.mulf %42, %80 : vector<16x128xf32>
    %91 = arith.addf %90, %85 : vector<16x128xf32>
    %92 = vector.shape_cast %80 : vector<16x128xf32> to vector<1x16x128xf32>
    %93 = vector.broadcast %92 : vector<1x16x128xf32> to vector<3x16x128xf32>
    %94 = arith.mulf %49, %93 : vector<3x16x128xf32>
    %95 = vector.shape_cast %85 : vector<16x128xf32> to vector<1x16x128xf32>
    %96 = vector.broadcast %95 : vector<1x16x128xf32> to vector<3x16x128xf32>
    %97 = arith.mulf %96, %89 : vector<3x16x128xf32>
    %98 = arith.addf %94, %97 : vector<3x16x128xf32>
    %cst_48 = arith.constant 1.000000e+00 : f32
    %99 = vector.broadcast %cst_48 : f32 to vector<16x128xf32>
    %100 = arith.subf %99, %71 : vector<16x128xf32>
    %101 = arith.mulf %52, %100 : vector<16x128xf32>
    %c2 = arith.constant 2 : index
    %c0_49 = arith.constant 0 : index
    %c0_50 = arith.constant 0 : index
    %102 = vector.load %arg1[%c2, %c0_49, %c0_50] : memref<4x16x128xf32, #tpu.memory_space<vmem>>, vector<1x16x128xf32>
    %103 = vector.shape_cast %102 : vector<1x16x128xf32> to vector<16x128xf32>
    %c2_51 = arith.constant 2 : index
    %c0_52 = arith.constant 0 : index
    %c0_53 = arith.constant 0 : index
    %104 = vector.load %arg2[%c2_51, %c0_52, %c0_53] : memref<4x16x128xf32, #tpu.memory_space<vmem>>, vector<1x16x128xf32>
    %105 = vector.shape_cast %104 : vector<1x16x128xf32> to vector<16x128xf32>
    %c2_54 = arith.constant 2 : index
    %c0_55 = arith.constant 0 : index
    %c0_56 = arith.constant 0 : index
    %c0_57 = arith.constant 0 : index
    %106 = vector.load %arg3[%c2_54, %c0_55, %c0_56, %c0_57] : memref<4x3x16x128xbf16, #tpu.memory_space<vmem>>, vector<1x3x16x128xbf16>
    %107 = vector.shape_cast %106 : vector<1x3x16x128xbf16> to vector<3x16x128xbf16>
    %108 = arith.extf %107 : vector<3x16x128xbf16> to vector<3x16x128xf32>
    %c2_58 = arith.constant 2 : index
    %c0_59 = arith.constant 0 : index
    %c0_60 = arith.constant 0 : index
    %c0_61 = arith.constant 0 : index
    %c0_62 = arith.constant 0 : index
    %109 = vector.load %arg4[%c2_58, %c0_59, %c0_60, %c0_61, %c0_62] : memref<4x3x3x16x128xbf16, #tpu.memory_space<vmem>>, vector<1x3x3x16x128xbf16>
    %110 = vector.shape_cast %109 : vector<1x3x3x16x128xbf16> to vector<3x3x16x128xbf16>
    %111 = arith.extf %110 : vector<3x3x16x128xbf16> to vector<3x3x16x128xf32>
    %cst_63 = arith.constant 0.000000e+00 : f32
    %112 = vector.broadcast %cst_63 : f32 to vector<16x128xf32>
    %113 = arith.subf %112, %105 : vector<16x128xf32>
    %cst_64 = arith.constant 1.000000e+04 : f32
    %114 = vector.broadcast %cst_64 : f32 to vector<16x128xf32>
    %115 = arith.mulf %113, %114 : vector<16x128xf32>
    %116 = arith.negf %115 : vector<16x128xf32>
    %117 = math.exp %116 : vector<16x128xf32>
    %cst_65 = arith.constant 1.000000e+00 : f32
    %118 = vector.broadcast %cst_65 : f32 to vector<16x128xf32>
    %119 = arith.addf %118, %117 : vector<16x128xf32>
    %120 = arith.divf %118, %119 : vector<16x128xf32>
    %cst_66 = arith.constant 2.560000e+02 : f32
    %121 = vector.broadcast %cst_66 : f32 to vector<16x128xf32>
    %122 = arith.subf %121, %103 : vector<16x128xf32>
    %cst_67 = arith.constant 0.001953125 : f32
    %123 = vector.broadcast %cst_67 : f32 to vector<16x128xf32>
    %124 = arith.mulf %122, %123 : vector<16x128xf32>
    %125 = arith.maximumf %76, %124 : vector<16x128xf32>
    %126 = arith.subf %76, %125 : vector<16x128xf32>
    %cst_68 = arith.constant 1.000000e+04 : f32
    %127 = vector.broadcast %cst_68 : f32 to vector<16x128xf32>
    %128 = arith.mulf %126, %127 : vector<16x128xf32>
    %129 = math.exp %128 : vector<16x128xf32>
    %130 = arith.subf %124, %125 : vector<16x128xf32>
    %cst_69 = arith.constant 1.000000e+04 : f32
    %131 = vector.broadcast %cst_69 : f32 to vector<16x128xf32>
    %132 = arith.mulf %130, %131 : vector<16x128xf32>
    %133 = math.exp %132 : vector<16x128xf32>
    %134 = arith.mulf %120, %133 : vector<16x128xf32>
    %135 = vector.shape_cast %108 : vector<3x16x128xf32> to vector<3x1x16x128xf32>
    %136 = vector.broadcast %135 : vector<3x1x16x128xf32> to vector<3x3x16x128xf32>
    %137 = arith.mulf %136, %111 : vector<3x3x16x128xf32>
    %cst_70 = arith.constant dense<0.000000e+00> : vector<3x16x128xf32>
    %138 = vector.multi_reduction <add>, %137, %cst_70 [0] : vector<3x3x16x128xf32> to vector<3x16x128xf32>
    %139 = arith.mulf %91, %129 : vector<16x128xf32>
    %140 = arith.addf %139, %134 : vector<16x128xf32>
    %141 = vector.shape_cast %129 : vector<16x128xf32> to vector<1x16x128xf32>
    %142 = vector.broadcast %141 : vector<1x16x128xf32> to vector<3x16x128xf32>
    %143 = arith.mulf %98, %142 : vector<3x16x128xf32>
    %144 = vector.shape_cast %134 : vector<16x128xf32> to vector<1x16x128xf32>
    %145 = vector.broadcast %144 : vector<1x16x128xf32> to vector<3x16x128xf32>
    %146 = arith.mulf %145, %138 : vector<3x16x128xf32>
    %147 = arith.addf %143, %146 : vector<3x16x128xf32>
    %cst_71 = arith.constant 1.000000e+00 : f32
    %148 = vector.broadcast %cst_71 : f32 to vector<16x128xf32>
    %149 = arith.subf %148, %120 : vector<16x128xf32>
    %150 = arith.mulf %101, %149 : vector<16x128xf32>
    %c3 = arith.constant 3 : index
    %c0_72 = arith.constant 0 : index
    %c0_73 = arith.constant 0 : index
    %151 = vector.load %arg1[%c3, %c0_72, %c0_73] : memref<4x16x128xf32, #tpu.memory_space<vmem>>, vector<1x16x128xf32>
    %152 = vector.shape_cast %151 : vector<1x16x128xf32> to vector<16x128xf32>
    %c3_74 = arith.constant 3 : index
    %c0_75 = arith.constant 0 : index
    %c0_76 = arith.constant 0 : index
    %153 = vector.load %arg2[%c3_74, %c0_75, %c0_76] : memref<4x16x128xf32, #tpu.memory_space<vmem>>, vector<1x16x128xf32>
    %154 = vector.shape_cast %153 : vector<1x16x128xf32> to vector<16x128xf32>
    %c3_77 = arith.constant 3 : index
    %c0_78 = arith.constant 0 : index
    %c0_79 = arith.constant 0 : index
    %c0_80 = arith.constant 0 : index
    %155 = vector.load %arg3[%c3_77, %c0_78, %c0_79, %c0_80] : memref<4x3x16x128xbf16, #tpu.memory_space<vmem>>, vector<1x3x16x128xbf16>
    %156 = vector.shape_cast %155 : vector<1x3x16x128xbf16> to vector<3x16x128xbf16>
    %157 = arith.extf %156 : vector<3x16x128xbf16> to vector<3x16x128xf32>
    %c3_81 = arith.constant 3 : index
    %c0_82 = arith.constant 0 : index
    %c0_83 = arith.constant 0 : index
    %c0_84 = arith.constant 0 : index
    %c0_85 = arith.constant 0 : index
    %158 = vector.load %arg4[%c3_81, %c0_82, %c0_83, %c0_84, %c0_85] : memref<4x3x3x16x128xbf16, #tpu.memory_space<vmem>>, vector<1x3x3x16x128xbf16>
    %159 = vector.shape_cast %158 : vector<1x3x3x16x128xbf16> to vector<3x3x16x128xbf16>
    %160 = arith.extf %159 : vector<3x3x16x128xbf16> to vector<3x3x16x128xf32>
    %cst_86 = arith.constant 0.000000e+00 : f32
    %161 = vector.broadcast %cst_86 : f32 to vector<16x128xf32>
    %162 = arith.subf %161, %154 : vector<16x128xf32>
    %cst_87 = arith.constant 1.000000e+04 : f32
    %163 = vector.broadcast %cst_87 : f32 to vector<16x128xf32>
    %164 = arith.mulf %162, %163 : vector<16x128xf32>
    %165 = arith.negf %164 : vector<16x128xf32>
    %166 = math.exp %165 : vector<16x128xf32>
    %cst_88 = arith.constant 1.000000e+00 : f32
    %167 = vector.broadcast %cst_88 : f32 to vector<16x128xf32>
    %168 = arith.addf %167, %166 : vector<16x128xf32>
    %169 = arith.divf %167, %168 : vector<16x128xf32>
    %cst_89 = arith.constant 2.560000e+02 : f32
    %170 = vector.broadcast %cst_89 : f32 to vector<16x128xf32>
    %171 = arith.subf %170, %152 : vector<16x128xf32>
    %cst_90 = arith.constant 0.001953125 : f32
    %172 = vector.broadcast %cst_90 : f32 to vector<16x128xf32>
    %173 = arith.mulf %171, %172 : vector<16x128xf32>
    %174 = arith.maximumf %125, %173 : vector<16x128xf32>
    %175 = arith.subf %125, %174 : vector<16x128xf32>
    %cst_91 = arith.constant 1.000000e+04 : f32
    %176 = vector.broadcast %cst_91 : f32 to vector<16x128xf32>
    %177 = arith.mulf %175, %176 : vector<16x128xf32>
    %178 = math.exp %177 : vector<16x128xf32>
    %179 = arith.subf %173, %174 : vector<16x128xf32>
    %cst_92 = arith.constant 1.000000e+04 : f32
    %180 = vector.broadcast %cst_92 : f32 to vector<16x128xf32>
    %181 = arith.mulf %179, %180 : vector<16x128xf32>
    %182 = math.exp %181 : vector<16x128xf32>
    %183 = arith.mulf %169, %182 : vector<16x128xf32>
    %184 = vector.shape_cast %157 : vector<3x16x128xf32> to vector<3x1x16x128xf32>
    %185 = vector.broadcast %184 : vector<3x1x16x128xf32> to vector<3x3x16x128xf32>
    %186 = arith.mulf %185, %160 : vector<3x3x16x128xf32>
    %cst_93 = arith.constant dense<0.000000e+00> : vector<3x16x128xf32>
    %187 = vector.multi_reduction <add>, %186, %cst_93 [0] : vector<3x3x16x128xf32> to vector<3x16x128xf32>
    %188 = arith.mulf %140, %178 : vector<16x128xf32>
    %189 = arith.addf %188, %183 : vector<16x128xf32>
    %190 = vector.shape_cast %178 : vector<16x128xf32> to vector<1x16x128xf32>
    %191 = vector.broadcast %190 : vector<1x16x128xf32> to vector<3x16x128xf32>
    %192 = arith.mulf %147, %191 : vector<3x16x128xf32>
    %193 = vector.shape_cast %183 : vector<16x128xf32> to vector<1x16x128xf32>
    %194 = vector.broadcast %193 : vector<1x16x128xf32> to vector<3x16x128xf32>
    %195 = arith.mulf %194, %187 : vector<3x16x128xf32>
    %196 = arith.addf %192, %195 : vector<3x16x128xf32>
    %cst_94 = arith.constant 1.000000e+00 : f32
    %197 = vector.broadcast %cst_94 : f32 to vector<16x128xf32>
    %198 = arith.subf %197, %169 : vector<16x128xf32>
    %199 = arith.mulf %150, %198 : vector<16x128xf32>
    %cst_95 = arith.constant 1.000000e-10 : f32
    %200 = vector.broadcast %cst_95 : f32 to vector<16x128xf32>
    %201 = arith.subf %200, %174 : vector<16x128xf32>
    %cst_96 = arith.constant 1.000000e+04 : f32
    %202 = vector.broadcast %cst_96 : f32 to vector<16x128xf32>
    %203 = arith.mulf %201, %202 : vector<16x128xf32>
    %204 = math.exp %203 : vector<16x128xf32>
    %cst_97 = arith.constant 1.000000e-10 : f32
    %205 = vector.broadcast %cst_97 : f32 to vector<16x128xf32>
    %206 = arith.maximumf %204, %205 : vector<16x128xf32>
    %207 = arith.addf %189, %206 : vector<16x128xf32>
    %208 = tpu.reciprocal %207 {approx = true} : vector<16x128xf32> -> vector<16x128xf32>
    %209 = vector.shape_cast %206 : vector<16x128xf32> to vector<1x16x128xf32>
    %210 = vector.broadcast %209 : vector<1x16x128xf32> to vector<3x16x128xf32>
    %211 = arith.addf %196, %210 : vector<3x16x128xf32>
    %212 = vector.shape_cast %208 : vector<16x128xf32> to vector<1x16x128xf32>
    %213 = vector.broadcast %212 : vector<1x16x128xf32> to vector<3x16x128xf32>
    %214 = arith.mulf %211, %213 : vector<3x16x128xf32>
    %215 = vector.extract_strided_slice %214 {offsets = [0, 0, 0], sizes = [1, 16, 128], strides = [1, 1, 1]} : vector<3x16x128xf32> to vector<1x16x128xf32>
    %216 = vector.shape_cast %215 : vector<1x16x128xf32> to vector<16x128xf32>
    %c0_98 = arith.constant 0 : index
    %c0_99 = arith.constant 0 : index
    %c0_100 = arith.constant 0 : index
    %217 = vector.load %arg5[%c0_98, %c0_99, %c0_100] : memref<4x16x128xf32, #tpu.memory_space<vmem>>, vector<1x16x128xf32>
    %218 = vector.shape_cast %217 : vector<1x16x128xf32> to vector<16x128xf32>
    %219 = vector.shape_cast %216 : vector<16x128xf32> to vector<1x16x128xf32>
    tpu.vector_store %arg5[%c0_98, %c0_99, %c0_100], %219 {strides = array<i32>} : memref<4x16x128xf32, #tpu.memory_space<vmem>>, vector<1x16x128xf32>,
    %220 = vector.extract_strided_slice %214 {offsets = [1, 0, 0], sizes = [1, 16, 128], strides = [1, 1, 1]} : vector<3x16x128xf32> to vector<1x16x128xf32>
    %221 = vector.shape_cast %220 : vector<1x16x128xf32> to vector<16x128xf32>
    %c1_101 = arith.constant 1 : index
    %c0_102 = arith.constant 0 : index
    %c0_103 = arith.constant 0 : index
    %222 = vector.load %arg5[%c1_101, %c0_102, %c0_103] : memref<4x16x128xf32, #tpu.memory_space<vmem>>, vector<1x16x128xf32>
    %223 = vector.shape_cast %222 : vector<1x16x128xf32> to vector<16x128xf32>
    %224 = vector.shape_cast %221 : vector<16x128xf32> to vector<1x16x128xf32>
    tpu.vector_store %arg5[%c1_101, %c0_102, %c0_103], %224 {strides = array<i32>} : memref<4x16x128xf32, #tpu.memory_space<vmem>>, vector<1x16x128xf32>,
    %225 = vector.extract_strided_slice %214 {offsets = [2, 0, 0], sizes = [1, 16, 128], strides = [1, 1, 1]} : vector<3x16x128xf32> to vector<1x16x128xf32>
    %226 = vector.shape_cast %225 : vector<1x16x128xf32> to vector<16x128xf32>
    %c2_104 = arith.constant 2 : index
    %c0_105 = arith.constant 0 : index
    %c0_106 = arith.constant 0 : index
    %227 = vector.load %arg5[%c2_104, %c0_105, %c0_106] : memref<4x16x128xf32, #tpu.memory_space<vmem>>, vector<1x16x128xf32>
    %228 = vector.shape_cast %227 : vector<1x16x128xf32> to vector<16x128xf32>
    %229 = vector.shape_cast %226 : vector<16x128xf32> to vector<1x16x128xf32>
    tpu.vector_store %arg5[%c2_104, %c0_105, %c0_106], %229 {strides = array<i32>} : memref<4x16x128xf32, #tpu.memory_space<vmem>>, vector<1x16x128xf32>,
    %cst_107 = arith.constant 1.000000e+00 : f32
    %230 = vector.broadcast %cst_107 : f32 to vector<16x128xf32>
    %231 = arith.subf %230, %199 : vector<16x128xf32>
    %c3_108 = arith.constant 3 : index
    %c0_109 = arith.constant 0 : index
    %c0_110 = arith.constant 0 : index
    %232 = vector.load %arg5[%c3_108, %c0_109, %c0_110] : memref<4x16x128xf32, #tpu.memory_space<vmem>>, vector<1x16x128xf32>
    %233 = vector.shape_cast %232 : vector<1x16x128xf32> to vector<16x128xf32>
    %234 = vector.shape_cast %231 : vector<16x128xf32> to vector<1x16x128xf32>
    tpu.vector_store %arg5[%c3_108, %c0_109, %c0_110], %234 {strides = array<i32>} : memref<4x16x128xf32, #tpu.memory_space<vmem>>, vector<1x16x128xf32>,
    return
  }
  func.func @transform_0(%arg0: i32) -> (i32, i32, i32) {
    %c0_i32 = arith.constant 0 : i32
    %c0_i32_0 = arith.constant 0 : i32
    %c0_i32_1 = arith.constant 0 : i32
    return %c0_i32, %arg0, %c0_i32_0 : i32, i32, i32
  }
  func.func @transform_1(%arg0: i32) -> (i32, i32, i32) {
    %c0_i32 = arith.constant 0 : i32
    %c0_i32_0 = arith.constant 0 : i32
    %c0_i32_1 = arith.constant 0 : i32
    return %c0_i32, %arg0, %c0_i32_0 : i32, i32, i32
  }
  func.func @transform_2(%arg0: i32) -> (i32, i32, i32, i32) {
    %c0_i32 = arith.constant 0 : i32
    %c0_i32_0 = arith.constant 0 : i32
    %c0_i32_1 = arith.constant 0 : i32
    %c0_i32_2 = arith.constant 0 : i32
    return %c0_i32, %c0_i32_0, %arg0, %c0_i32_1 : i32, i32, i32, i32
  }
  func.func @transform_3(%arg0: i32) -> (i32, i32, i32, i32, i32) {
    %c0_i32 = arith.constant 0 : i32
    %c0_i32_0 = arith.constant 0 : i32
    %c0_i32_1 = arith.constant 0 : i32
    %c0_i32_2 = arith.constant 0 : i32
    %c0_i32_3 = arith.constant 0 : i32
    return %c0_i32, %c0_i32_0, %c0_i32_1, %arg0, %c0_i32_2 : i32, i32, i32, i32, i32
  }
  func.func @transform_4(%arg0: i32) -> (i32, i32, i32) {
    %c0_i32 = arith.constant 0 : i32
    %c0_i32_0 = arith.constant 0 : i32
    %c0_i32_1 = arith.constant 0 : i32
    return %c0_i32, %arg0, %c0_i32_0 : i32, i32, i32
  }
}

</mosaic_0001>

<llo_original>
// kernel: clean_shader.1
$region0: #{clean_shader.1}
  #allocation0 [shape = 'u32[]', space=smem, size = 0x4, offset = 0x4, fixed_abs, tag = 'smem constant byte address 0x4 - core index']
  #allocation1 [shape = 'u32[144,128]{1,0:T(1,128)}', space=vmem, size = 0x12000, scoped, tag = 'internal scratch']
  %s0 = inlined_call_operand.vmem [shape: f32[4,16,128], index: 0, kind: input, shape index: {}]
  %s1 = inlined_call_operand.vmem [shape: f32[4,16,128], index: 1, kind: input, shape index: {}]
  %s2 = inlined_call_operand.vmem [shape: bf16[4,3,16,128], index: 2, kind: input, shape index: {}]
  %s3 = inlined_call_operand.vmem [shape: bf16[4,3,3,16,128], index: 3, kind: input, shape index: {}]
  %s4 = inlined_call_operand.vmem [shape: f32[4,16,128], index: 4, kind: output, shape index: {}]
  %s5 = sld [smem:[#allocation0]]
  $region26: #{clean_shader.1} parent=0
    _
  %s7 = ssub.s32 1, %s5
  %s8 = scalar_select 0, %s7, %s5
  // Predicated region
  $region2: #{clean_shader.1} parent=0 // pred_check
    _
  $region3: #{clean_shader.1} parent=0 // pred_check_branch
    %10 = sbr.rel (0) target = $region5
  $region4: #{clean_shader.1} parent=0 // pred_region
    _
  $region5: #{clean_shader.1} parent=0 // pred_fallthru
    _
  // Predicated region
  $region6: #{clean_shader.1} parent=0 // pred_check
    _
  $region7: #{clean_shader.1} parent=0 // pred_check_branch
    %12 = sbr.rel (0) target = $region9
  $region8: #{clean_shader.1} parent=0 // pred_region
    _
  $region9: #{clean_shader.1} parent=0 // pred_fallthru
    _
  // Predicated region
  $region10: #{clean_shader.1} parent=0 // pred_check
    _
  $region11: #{clean_shader.1} parent=0 // pred_check_branch
    %14 = sbr.rel (0) target = $region13
  $region12: #{clean_shader.1} parent=0 // pred_region
    _
  $region13: #{clean_shader.1} parent=0 // pred_fallthru
    _
  // Predicated region
  $region14: #{clean_shader.1} parent=0 // pred_check
    _
  $region15: #{clean_shader.1} parent=0 // pred_check_branch
    %16 = sbr.rel (0) target = $region17
  $region16: #{clean_shader.1} parent=0 // pred_region
    _
  $region17: #{clean_shader.1} parent=0 // pred_fallthru
    _
  %v17 = vld [vmem:[%s0] sm:$0xff]
  %v18 = vld [vmem:[%s0 + $0x8] sm:$0xff]
  %v19 = vld [vmem:[%s1] sm:$0xff]
  %v20 = vld [vmem:[%s1 + $0x8] sm:$0xff]
  %v21 = vld [vmem:[%s2] sm:$0xf]
  %v22 = vld [vmem:[%s2 + $0x4] sm:$0xf]
  %v23 = vld [vmem:[%s2 + $0x8] sm:$0xf]
  %v24 = vld [vmem:[%s2 + $0xc] sm:$0xf]
  %v25 = vld [vmem:[%s2 + $0x10] sm:$0xf]
  %v26 = vld [vmem:[%s2 + $0x14] sm:$0xf]
  %v27 = vunpack.c.l.bf16 %v21
  %v28 = vunpack.c.l.bf16 %v22
  %v29 = vunpack.c.l.bf16 %v23
  %v30 = vunpack.c.l.bf16 %v24
  %v31 = vunpack.c.l.bf16 %v25
  %v32 = vunpack.c.l.bf16 %v26
  %v33 = vld [vmem:[%s3] sm:$0xf]
  %v34 = vld [vmem:[%s3 + $0x4] sm:$0xf]
  %v35 = vld [vmem:[%s3 + $0x8] sm:$0xf]
  %v36 = vld [vmem:[%s3 + $0xc] sm:$0xf]
  %v37 = vld [vmem:[%s3 + $0x10] sm:$0xf]
  %v38 = vld [vmem:[%s3 + $0x14] sm:$0xf]
  %v39 = vld [vmem:[%s3 + $0x18] sm:$0xf]
  %v40 = vld [vmem:[%s3 + $0x1c] sm:$0xf]
  %v41 = vld [vmem:[%s3 + $0x20] sm:$0xf]
  %v42 = vld [vmem:[%s3 + $0x24] sm:$0xf]
  %v43 = vld [vmem:[%s3 + $0x28] sm:$0xf]
  %v44 = vld [vmem:[%s3 + $0x2c] sm:$0xf]
  %v45 = vld [vmem:[%s3 + $0x30] sm:$0xf]
  %v46 = vld [vmem:[%s3 + $0x34] sm:$0xf]
  %v47 = vld [vmem:[%s3 + $0x38] sm:$0xf]
  %v48 = vld [vmem:[%s3 + $0x3c] sm:$0xf]
  %v49 = vld [vmem:[%s3 + $0x40] sm:$0xf]
  %v50 = vld [vmem:[%s3 + $0x44] sm:$0xf]
  %v51 = vunpack.c.l.bf16 %v33
  %v52 = vunpack.c.l.bf16 %v34
  %v53 = vunpack.c.l.bf16 %v35
  %v54 = vunpack.c.l.bf16 %v36
  %v55 = vunpack.c.l.bf16 %v37
  %v56 = vunpack.c.l.bf16 %v38
  %v57 = vunpack.c.l.bf16 %v39
  %v58 = vunpack.c.l.bf16 %v40
  %v59 = vunpack.c.l.bf16 %v41
  %v60 = vunpack.c.l.bf16 %v42
  %v61 = vunpack.c.l.bf16 %v43
  %v62 = vunpack.c.l.bf16 %v44
  %v63 = vunpack.c.l.bf16 %v45
  %v64 = vunpack.c.l.bf16 %v46
  %v65 = vunpack.c.l.bf16 %v47
  %v66 = vunpack.c.l.bf16 %v48
  %v67 = vunpack.c.l.bf16 %v49
  %v68 = vunpack.c.l.bf16 %v50
  %v69 = vsub.f32 0.0, %v19
  %v70 = vsub.f32 0.0, %v20
  %v71 = vmul.f32 %v69, 10000.0
  %v72 = vmul.f32 %v70, 10000.0
  %v73 = vxor.u32 %v71, 2147483648
  %v74 = vxor.u32 %v72, 2147483648
  %v75 = vmul.f32 %v73, 1.442695
  %v76 = vpow.pop %v75
  %v77 = vmul.f32 %v74, 1.442695
  %v78 = vpow.pop %v77
  %v79 = vadd.f32 %v76, 1.0
  %v80 = vadd.f32 %v78, 1.0
  %v81 = vrcp.pop %v79
  %v82 = vmul.f32 1.0, %v81
  %v83 = vrcp.pop %v80
  %v84 = vmul.f32 1.0, %v83
  %v85 = vsub.f32 256.0, %v17
  %v86 = vsub.f32 256.0, %v18
  %v87 = vmul.f32 %v85, 0.001953125
  %v88 = vmul.f32 %v86, 0.001953125
  %v89 = vmax.f32 %v87, 1e-10
  %v90 = vmax.f32 %v88, 1e-10
  %v91 = vsub.f32 1e-10, %v89
  %v92 = vsub.f32 1e-10, %v90
  %v93 = vmul.f32 %v91, 10000.0
  %v94 = vmul.f32 %v92, 10000.0
  %v95 = vmul.f32 %v93, 1.442695
  %v96 = vpow.pop %v95
  %v97 = vmul.f32 %v94, 1.442695
  %v98 = vpow.pop %v97
  %v99 = vsub.f32 %v87, %v89
  %v100 = vsub.f32 %v88, %v90
  %v101 = vmul.f32 %v99, 10000.0
  %v102 = vmul.f32 %v100, 10000.0
  %v103 = vmul.f32 %v101, 1.442695
  %v104 = vpow.pop %v103
  %v105 = vmul.f32 %v102, 1.442695
  %v106 = vpow.pop %v105
  %v107 = vmul.f32 %v82, %v104
  %v108 = vmul.f32 %v84, %v106
  %v109 = vmul.f32 %v27, %v51
  %v110 = vmul.f32 %v28, %v52
  %v111 = vmul.f32 %v27, %v53
  %v112 = vmul.f32 %v28, %v54
  %v113 = vmul.f32 %v27, %v55
  %v114 = vmul.f32 %v28, %v56
  %v115 = vmul.f32 %v29, %v57
  %v116 = vmul.f32 %v30, %v58
  %v117 = vmul.f32 %v29, %v59
  %v118 = vmul.f32 %v30, %v60
  %v119 = vmul.f32 %v29, %v61
  %v120 = vmul.f32 %v30, %v62
  %v121 = vmul.f32 %v31, %v63
  %v122 = vmul.f32 %v32, %v64
  %v123 = vmul.f32 %v31, %v65
  %v124 = vmul.f32 %v32, %v66
  %v125 = vmul.f32 %v31, %v67
  %v126 = vmul.f32 %v32, %v68
  %v127 = vadd.f32 %v109, %v115
  %v128 = vadd.f32 %v127, %v121
  %v129 = vadd.f32 %v110, %v116
  %v130 = vadd.f32 %v129, %v122
  %v131 = vadd.f32 %v111, %v117
  %v132 = vadd.f32 %v131, %v123
  %v133 = vadd.f32 %v112, %v118
  %v134 = vadd.f32 %v133, %v124
  %v135 = vadd.f32 %v113, %v119
  %v136 = vadd.f32 %v135, %v125
  %v137 = vadd.f32 %v114, %v120
  %v138 = vadd.f32 %v137, %v126
  %v139 = vmul.f32 %v96, 0.0
  %v140 = vmul.f32 %v98, 0.0
  %v141 = vadd.f32 %v139, %v107
  %v142 = vadd.f32 %v140, %v108
  %v143 = vmul.f32 %v107, %v128
  %v144 = vmul.f32 %v108, %v130
  %v145 = vmul.f32 %v107, %v132
  %v146 = vmul.f32 %v108, %v134
  %v147 = vmul.f32 %v107, %v136
  %v148 = vmul.f32 %v108, %v138
  %v149 = vadd.f32 %v139, %v143
  %v150 = vadd.f32 %v140, %v144
  %v151 = vadd.f32 %v139, %v145
  %v152 = vadd.f32 %v140, %v146
  %v153 = vadd.f32 %v139, %v147
  %v154 = vadd.f32 %v140, %v148
  %v155 = vsub.f32 1.0, %v82
  %v156 = vsub.f32 1.0, %v84
  %s157 = scalar_lea.vmem %s0, 16
  %v158 = vld [vmem:[%s157] sm:$0xff]
  %v159 = vld [vmem:[%s157 + $0x8] sm:$0xff]
  %s160 = scalar_lea.vmem %s1, 16
  %v161 = vld [vmem:[%s160] sm:$0xff]
  %v162 = vld [vmem:[%s160 + $0x8] sm:$0xff]
  %s163 = scalar_lea.vmem %s2, 24
  %v164 = vld [vmem:[%s163] sm:$0xf]
  %v165 = vld [vmem:[%s163 + $0x4] sm:$0xf]
  %v166 = vld [vmem:[%s163 + $0x8] sm:$0xf]
  %v167 = vld [vmem:[%s163 + $0xc] sm:$0xf]
  %v168 = vld [vmem:[%s163 + $0x10] sm:$0xf]
  %v169 = vld [vmem:[%s163 + $0x14] sm:$0xf]
  %v170 = vunpack.c.l.bf16 %v164
  %v171 = vunpack.c.l.bf16 %v165
  %v172 = vunpack.c.l.bf16 %v166
  %v173 = vunpack.c.l.bf16 %v167
  %v174 = vunpack.c.l.bf16 %v168
  %v175 = vunpack.c.l.bf16 %v169
  %s176 = scalar_lea.vmem %s3, 72
  %v177 = vld [vmem:[%s176] sm:$0xf]
  %v178 = vld [vmem:[%s176 + $0x4] sm:$0xf]
  %v179 = vld [vmem:[%s176 + $0x8] sm:$0xf]
  %v180 = vld [vmem:[%s176 + $0xc] sm:$0xf]
  %v181 = vld [vmem:[%s176 + $0x10] sm:$0xf]
  %v182 = vld [vmem:[%s176 + $0x14] sm:$0xf]
  %v183 = vld [vmem:[%s176 + $0x18] sm:$0xf]
  %v184 = vld [vmem:[%s176 + $0x1c] sm:$0xf]
  %v185 = vld [vmem:[%s176 + $0x20] sm:$0xf]
  %v186 = vld [vmem:[%s176 + $0x24] sm:$0xf]
  %v187 = vld [vmem:[%s176 + $0x28] sm:$0xf]
  %v188 = vld [vmem:[%s176 + $0x2c] sm:$0xf]
  %v189 = vld [vmem:[%s176 + $0x30] sm:$0xf]
  %v190 = vld [vmem:[%s176 + $0x34] sm:$0xf]
  %v191 = vld [vmem:[%s176 + $0x38] sm:$0xf]
  %v192 = vld [vmem:[%s176 + $0x3c] sm:$0xf]
  %v193 = vld [vmem:[%s176 + $0x40] sm:$0xf]
  %v194 = vld [vmem:[%s176 + $0x44] sm:$0xf]
  %v195 = vunpack.c.l.bf16 %v177
  %v196 = vunpack.c.l.bf16 %v178
  %v197 = vunpack.c.l.bf16 %v179
  %v198 = vunpack.c.l.bf16 %v180
  %v199 = vunpack.c.l.bf16 %v181
  %v200 = vunpack.c.l.bf16 %v182
  %v201 = vunpack.c.l.bf16 %v183
  %v202 = vunpack.c.l.bf16 %v184
  %v203 = vunpack.c.l.bf16 %v185
  %v204 = vunpack.c.l.bf16 %v186
  %v205 = vunpack.c.l.bf16 %v187
  %v206 = vunpack.c.l.bf16 %v188
  %v207 = vunpack.c.l.bf16 %v189
  %v208 = vunpack.c.l.bf16 %v190
  %v209 = vunpack.c.l.bf16 %v191
  %v210 = vunpack.c.l.bf16 %v192
  %v211 = vunpack.c.l.bf16 %v193
  %v212 = vunpack.c.l.bf16 %v194
  %v213 = vsub.f32 0.0, %v161
  %v214 = vsub.f32 0.0, %v162
  %v215 = vmul.f32 %v213, 10000.0
  %v216 = vmul.f32 %v214, 10000.0
  %v217 = vxor.u32 %v215, 2147483648
  %v218 = vxor.u32 %v216, 2147483648
  %v219 = vmul.f32 %v217, 1.442695
  %v220 = vpow.pop %v219
  %v221 = vmul.f32 %v218, 1.442695
  %v222 = vpow.pop %v221
  %v223 = vadd.f32 %v220, 1.0
  %v224 = vadd.f32 %v222, 1.0
  %v225 = vrcp.pop %v223
  %v226 = vmul.f32 1.0, %v225
  %v227 = vrcp.pop %v224
  %v228 = vmul.f32 1.0, %v227
  %v229 = vsub.f32 256.0, %v158
  %v230 = vsub.f32 256.0, %v159
  %v231 = vmul.f32 %v229, 0.001953125
  %v232 = vmul.f32 %v230, 0.001953125
  %v233 = vmax.f32 %v89, %v231
  %v234 = vmax.f32 %v90, %v232
  %v235 = vsub.f32 %v89, %v233
  %v236 = vsub.f32 %v90, %v234
  %v237 = vmul.f32 %v235, 10000.0
  %v238 = vmul.f32 %v236, 10000.0
  %v239 = vmul.f32 %v237, 1.442695
  %v240 = vpow.pop %v239
  %v241 = vmul.f32 %v238, 1.442695
  %v242 = vpow.pop %v241
  %v243 = vsub.f32 %v231, %v233
  %v244 = vsub.f32 %v232, %v234
  %v245 = vmul.f32 %v243, 10000.0
  %v246 = vmul.f32 %v244, 10000.0
  %v247 = vmul.f32 %v245, 1.442695
  %v248 = vpow.pop %v247
  %v249 = vmul.f32 %v246, 1.442695
  %v250 = vpow.pop %v249
  %v251 = vmul.f32 %v226, %v248
  %v252 = vmul.f32 %v228, %v250
  %v253 = vmul.f32 %v170, %v195
  %v254 = vmul.f32 %v171, %v196
  %v255 = vmul.f32 %v170, %v197
  %v256 = vmul.f32 %v171, %v198
  %v257 = vmul.f32 %v170, %v199
  %v258 = vmul.f32 %v171, %v200
  %v259 = vmul.f32 %v172, %v201
  %v260 = vmul.f32 %v173, %v202
  %v261 = vmul.f32 %v172, %v203
  %v262 = vmul.f32 %v173, %v204
  %v263 = vmul.f32 %v172, %v205
  %v264 = vmul.f32 %v173, %v206
  %v265 = vmul.f32 %v174, %v207
  %v266 = vmul.f32 %v175, %v208
  %v267 = vmul.f32 %v174, %v209
  %v268 = vmul.f32 %v175, %v210
  %v269 = vmul.f32 %v174, %v211
  %v270 = vmul.f32 %v175, %v212
  %v271 = vadd.f32 %v253, %v259
  %v272 = vadd.f32 %v271, %v265
  %v273 = vadd.f32 %v254, %v260
  %v274 = vadd.f32 %v273, %v266
  %v275 = vadd.f32 %v255, %v261
  %v276 = vadd.f32 %v275, %v267
  %v277 = vadd.f32 %v256, %v262
  %v278 = vadd.f32 %v277, %v268
  %v279 = vadd.f32 %v257, %v263
  %v280 = vadd.f32 %v279, %v269
  %v281 = vadd.f32 %v258, %v264
  %v282 = vadd.f32 %v281, %v270
  %v283 = vmul.f32 %v141, %v240
  %v284 = vmul.f32 %v142, %v242
  %v285 = vadd.f32 %v283, %v251
  %v286 = vadd.f32 %v284, %v252
  %v287 = vmul.f32 %v149, %v240
  %v288 = vmul.f32 %v150, %v242
  %v289 = vmul.f32 %v151, %v240
  %v290 = vmul.f32 %v152, %v242
  %v291 = vmul.f32 %v153, %v240
  %v292 = vmul.f32 %v154, %v242
  %v293 = vmul.f32 %v251, %v272
  %v294 = vmul.f32 %v252, %v274
  %v295 = vmul.f32 %v251, %v276
  %v296 = vmul.f32 %v252, %v278
  %v297 = vmul.f32 %v251, %v280
  %v298 = vmul.f32 %v252, %v282
  %v299 = vadd.f32 %v287, %v293
  %v300 = vadd.f32 %v288, %v294
  %v301 = vadd.f32 %v289, %v295
  %v302 = vadd.f32 %v290, %v296
  %v303 = vadd.f32 %v291, %v297
  %v304 = vadd.f32 %v292, %v298
  %v305 = vsub.f32 1.0, %v226
  %v306 = vsub.f32 1.0, %v228
  %v307 = vmul.f32 %v155, %v305
  %v308 = vmul.f32 %v156, %v306
  %s309 = scalar_lea.vmem %s0, 32
  %v310 = vld [vmem:[%s309] sm:$0xff]
  %v311 = vld [vmem:[%s309 + $0x8] sm:$0xff]
  %s312 = scalar_lea.vmem %s1, 32
  %v313 = vld [vmem:[%s312] sm:$0xff]
  %v314 = vld [vmem:[%s312 + $0x8] sm:$0xff]
  %s315 = scalar_lea.vmem %s2, 48
  %v316 = vld [vmem:[%s315] sm:$0xf]
  %v317 = vld [vmem:[%s315 + $0x4] sm:$0xf]
  %v318 = vld [vmem:[%s315 + $0x8] sm:$0xf]
  %v319 = vld [vmem:[%s315 + $0xc] sm:$0xf]
  %v320 = vld [vmem:[%s315 + $0x10] sm:$0xf]
  %v321 = vld [vmem:[%s315 + $0x14] sm:$0xf]
  %v322 = vunpack.c.l.bf16 %v316
  %v323 = vunpack.c.l.bf16 %v317
  %v324 = vunpack.c.l.bf16 %v318
  %v325 = vunpack.c.l.bf16 %v319
  %v326 = vunpack.c.l.bf16 %v320
  %v327 = vunpack.c.l.bf16 %v321
  %s328 = scalar_lea.vmem %s3, 144
  %v329 = vld [vmem:[%s328] sm:$0xf]
  %v330 = vld [vmem:[%s328 + $0x4] sm:$0xf]
  %v331 = vld [vmem:[%s328 + $0x8] sm:$0xf]
  %v332 = vld [vmem:[%s328 + $0xc] sm:$0xf]
  %v333 = vld [vmem:[%s328 + $0x10] sm:$0xf]
  %v334 = vld [vmem:[%s328 + $0x14] sm:$0xf]
  %v335 = vld [vmem:[%s328 + $0x18] sm:$0xf]
  %v336 = vld [vmem:[%s328 + $0x1c] sm:$0xf]
  %v337 = vld [vmem:[%s328 + $0x20] sm:$0xf]
  %v338 = vld [vmem:[%s328 + $0x24] sm:$0xf]
  %v339 = vld [vmem:[%s328 + $0x28] sm:$0xf]
  %v340 = vld [vmem:[%s328 + $0x2c] sm:$0xf]
  %v341 = vld [vmem:[%s328 + $0x30] sm:$0xf]
  %v342 = vld [vmem:[%s328 + $0x34] sm:$0xf]
  %v343 = vld [vmem:[%s328 + $0x38] sm:$0xf]
  %v344 = vld [vmem:[%s328 + $0x3c] sm:$0xf]
  %v345 = vld [vmem:[%s328 + $0x40] sm:$0xf]
  %v346 = vld [vmem:[%s328 + $0x44] sm:$0xf]
  %v347 = vunpack.c.l.bf16 %v329
  %v348 = vunpack.c.l.bf16 %v330
  %v349 = vunpack.c.l.bf16 %v331
  %v350 = vunpack.c.l.bf16 %v332
  %v351 = vunpack.c.l.bf16 %v333
  %v352 = vunpack.c.l.bf16 %v334
  %v353 = vunpack.c.l.bf16 %v335
  %v354 = vunpack.c.l.bf16 %v336
  %v355 = vunpack.c.l.bf16 %v337
  %v356 = vunpack.c.l.bf16 %v338
  %v357 = vunpack.c.l.bf16 %v339
  %v358 = vunpack.c.l.bf16 %v340
  %v359 = vunpack.c.l.bf16 %v341
  %v360 = vunpack.c.l.bf16 %v342
  %v361 = vunpack.c.l.bf16 %v343
  %v362 = vunpack.c.l.bf16 %v344
  %v363 = vunpack.c.l.bf16 %v345
  %v364 = vunpack.c.l.bf16 %v346
  %v365 = vsub.f32 0.0, %v313
  %v366 = vsub.f32 0.0, %v314
  %v367 = vmul.f32 %v365, 10000.0
  %v368 = vmul.f32 %v366, 10000.0
  %v369 = vxor.u32 %v367, 2147483648
  %v370 = vxor.u32 %v368, 2147483648
  %v371 = vmul.f32 %v369, 1.442695
  %v372 = vpow.pop %v371
  %v373 = vmul.f32 %v370, 1.442695
  %v374 = vpow.pop %v373
  %v375 = vadd.f32 %v372, 1.0
  %v376 = vadd.f32 %v374, 1.0
  %v377 = vrcp.pop %v375
  %v378 = vmul.f32 1.0, %v377
  %v379 = vrcp.pop %v376
  %v380 = vmul.f32 1.0, %v379
  %v381 = vsub.f32 256.0, %v310
  %v382 = vsub.f32 256.0, %v311
  %v383 = vmul.f32 %v381, 0.001953125
  %v384 = vmul.f32 %v382, 0.001953125
  %v385 = vmax.f32 %v233, %v383
  %v386 = vmax.f32 %v234, %v384
  %v387 = vsub.f32 %v233, %v385
  %v388 = vsub.f32 %v234, %v386
  %v389 = vmul.f32 %v387, 10000.0
  %v390 = vmul.f32 %v388, 10000.0
  %v391 = vmul.f32 %v389, 1.442695
  %v392 = vpow.pop %v391
  %v393 = vmul.f32 %v390, 1.442695
  %v394 = vpow.pop %v393
  %v395 = vsub.f32 %v383, %v385
  %v396 = vsub.f32 %v384, %v386
  %v397 = vmul.f32 %v395, 10000.0
  %v398 = vmul.f32 %v396, 10000.0
  %v399 = vmul.f32 %v397, 1.442695
  %v400 = vpow.pop %v399
  %v401 = vmul.f32 %v398, 1.442695
  %v402 = vpow.pop %v401
  %v403 = vmul.f32 %v378, %v400
  %v404 = vmul.f32 %v380, %v402
  %v405 = vmul.f32 %v322, %v347
  %v406 = vmul.f32 %v323, %v348
  %v407 = vmul.f32 %v322, %v349
  %v408 = vmul.f32 %v323, %v350
  %v409 = vmul.f32 %v322, %v351
  %v410 = vmul.f32 %v323, %v352
  %v411 = vmul.f32 %v324, %v353
  %v412 = vmul.f32 %v325, %v354
  %v413 = vmul.f32 %v324, %v355
  %v414 = vmul.f32 %v325, %v356
  %v415 = vmul.f32 %v324, %v357
  %v416 = vmul.f32 %v325, %v358
  %v417 = vmul.f32 %v326, %v359
  %v418 = vmul.f32 %v327, %v360
  %v419 = vmul.f32 %v326, %v361
  %v420 = vmul.f32 %v327, %v362
  %v421 = vmul.f32 %v326, %v363
  %v422 = vmul.f32 %v327, %v364
  %v423 = vadd.f32 %v405, %v411
  %v424 = vadd.f32 %v423, %v417
  %v425 = vadd.f32 %v406, %v412
  %v426 = vadd.f32 %v425, %v418
  %v427 = vadd.f32 %v407, %v413
  %v428 = vadd.f32 %v427, %v419
  %v429 = vadd.f32 %v408, %v414
  %v430 = vadd.f32 %v429, %v420
  %v431 = vadd.f32 %v409, %v415
  %v432 = vadd.f32 %v431, %v421
  %v433 = vadd.f32 %v410, %v416
  %v434 = vadd.f32 %v433, %v422
  %v435 = vmul.f32 %v285, %v392
  %v436 = vmul.f32 %v286, %v394
  %v437 = vadd.f32 %v435, %v403
  %v438 = vadd.f32 %v436, %v404
  %v439 = vmul.f32 %v299, %v392
  %v440 = vmul.f32 %v300, %v394
  %v441 = vmul.f32 %v301, %v392
  %v442 = vmul.f32 %v302, %v394
  %v443 = vmul.f32 %v303, %v392
  %v444 = vmul.f32 %v304, %v394
  %v445 = vmul.f32 %v403, %v424
  %v446 = vmul.f32 %v404, %v426
  %v447 = vmul.f32 %v403, %v428
  %v448 = vmul.f32 %v404, %v430
  %v449 = vmul.f32 %v403, %v432
  %v450 = vmul.f32 %v404, %v434
  %v451 = vadd.f32 %v439, %v445
  %v452 = vadd.f32 %v440, %v446
  %v453 = vadd.f32 %v441, %v447
  %v454 = vadd.f32 %v442, %v448
  %v455 = vadd.f32 %v443, %v449
  %v456 = vadd.f32 %v444, %v450
  %v457 = vsub.f32 1.0, %v378
  %v458 = vsub.f32 1.0, %v380
  %v459 = vmul.f32 %v307, %v457
  %v460 = vmul.f32 %v308, %v458
  %s461 = scalar_lea.vmem %s0, 48
  %v462 = vld [vmem:[%s461] sm:$0xff]
  %v463 = vld [vmem:[%s461 + $0x8] sm:$0xff]
  %s464 = scalar_lea.vmem %s1, 48
  %v465 = vld [vmem:[%s464] sm:$0xff]
  %v466 = vld [vmem:[%s464 + $0x8] sm:$0xff]
  %s467 = scalar_lea.vmem %s2, 72
  %v468 = vld [vmem:[%s467] sm:$0xf]
  %v469 = vld [vmem:[%s467 + $0x4] sm:$0xf]
  %v470 = vld [vmem:[%s467 + $0x8] sm:$0xf]
  %v471 = vld [vmem:[%s467 + $0xc] sm:$0xf]
  %v472 = vld [vmem:[%s467 + $0x10] sm:$0xf]
  %v473 = vld [vmem:[%s467 + $0x14] sm:$0xf]
  %v474 = vunpack.c.l.bf16 %v468
  %v475 = vunpack.c.l.bf16 %v469
  %v476 = vunpack.c.l.bf16 %v470
  %v477 = vunpack.c.l.bf16 %v471
  %v478 = vunpack.c.l.bf16 %v472
  %v479 = vunpack.c.l.bf16 %v473
  %s480 = scalar_lea.vmem %s3, 216
  %v481 = vld [vmem:[%s480] sm:$0xf]
  %v482 = vld [vmem:[%s480 + $0x4] sm:$0xf]
  %v483 = vld [vmem:[%s480 + $0x8] sm:$0xf]
  %v484 = vld [vmem:[%s480 + $0xc] sm:$0xf]
  %v485 = vld [vmem:[%s480 + $0x10] sm:$0xf]
  %v486 = vld [vmem:[%s480 + $0x14] sm:$0xf]
  %v487 = vld [vmem:[%s480 + $0x18] sm:$0xf]
  %v488 = vld [vmem:[%s480 + $0x1c] sm:$0xf]
  %v489 = vld [vmem:[%s480 + $0x20] sm:$0xf]
  %v490 = vld [vmem:[%s480 + $0x24] sm:$0xf]
  %v491 = vld [vmem:[%s480 + $0x28] sm:$0xf]
  %v492 = vld [vmem:[%s480 + $0x2c] sm:$0xf]
  %v493 = vld [vmem:[%s480 + $0x30] sm:$0xf]
  %v494 = vld [vmem:[%s480 + $0x34] sm:$0xf]
  %v495 = vld [vmem:[%s480 + $0x38] sm:$0xf]
  %v496 = vld [vmem:[%s480 + $0x3c] sm:$0xf]
  %v497 = vld [vmem:[%s480 + $0x40] sm:$0xf]
  %v498 = vld [vmem:[%s480 + $0x44] sm:$0xf]
  %v499 = vunpack.c.l.bf16 %v481
  %v500 = vunpack.c.l.bf16 %v482
  %v501 = vunpack.c.l.bf16 %v483
  %v502 = vunpack.c.l.bf16 %v484
  %v503 = vunpack.c.l.bf16 %v485
  %v504 = vunpack.c.l.bf16 %v486
  %v505 = vunpack.c.l.bf16 %v487
  %v506 = vunpack.c.l.bf16 %v488
  %v507 = vunpack.c.l.bf16 %v489
  %v508 = vunpack.c.l.bf16 %v490
  %v509 = vunpack.c.l.bf16 %v491
  %v510 = vunpack.c.l.bf16 %v492
  %v511 = vunpack.c.l.bf16 %v493
  %v512 = vunpack.c.l.bf16 %v494
  %v513 = vunpack.c.l.bf16 %v495
  %v514 = vunpack.c.l.bf16 %v496
  %v515 = vunpack.c.l.bf16 %v497
  %v516 = vunpack.c.l.bf16 %v498
  %v517 = vsub.f32 0.0, %v465
  %v518 = vsub.f32 0.0, %v466
  %v519 = vmul.f32 %v517, 10000.0
  %v520 = vmul.f32 %v518, 10000.0
  %v521 = vxor.u32 %v519, 2147483648
  %v522 = vxor.u32 %v520, 2147483648
  %v523 = vmul.f32 %v521, 1.442695
  %v524 = vpow.pop %v523
  %v525 = vmul.f32 %v522, 1.442695
  %v526 = vpow.pop %v525
  %v527 = vadd.f32 %v524, 1.0
  %v528 = vadd.f32 %v526, 1.0
  %v529 = vrcp.pop %v527
  %v530 = vmul.f32 1.0, %v529
  %v531 = vrcp.pop %v528
  %v532 = vmul.f32 1.0, %v531
  %v533 = vsub.f32 256.0, %v462
  %v534 = vsub.f32 256.0, %v463
  %v535 = vmul.f32 %v533, 0.001953125
  %v536 = vmul.f32 %v534, 0.001953125
  %v537 = vmax.f32 %v385, %v535
  %v538 = vmax.f32 %v386, %v536
  %v539 = vsub.f32 %v385, %v537
  %v540 = vsub.f32 %v386, %v538
  %v541 = vmul.f32 %v539, 10000.0
  %v542 = vmul.f32 %v540, 10000.0
  %v543 = vmul.f32 %v541, 1.442695
  %v544 = vpow.pop %v543
  %v545 = vmul.f32 %v542, 1.442695
  %v546 = vpow.pop %v545
  %v547 = vsub.f32 %v535, %v537
  %v548 = vsub.f32 %v536, %v538
  %v549 = vmul.f32 %v547, 10000.0
  %v550 = vmul.f32 %v548, 10000.0
  %v551 = vmul.f32 %v549, 1.442695
  %v552 = vpow.pop %v551
  %v553 = vmul.f32 %v550, 1.442695
  %v554 = vpow.pop %v553
  %v555 = vmul.f32 %v530, %v552
  %v556 = vmul.f32 %v532, %v554
  %v557 = vmul.f32 %v474, %v499
  %v558 = vmul.f32 %v475, %v500
  %v559 = vmul.f32 %v474, %v501
  %v560 = vmul.f32 %v475, %v502
  %v561 = vmul.f32 %v474, %v503
  %v562 = vmul.f32 %v475, %v504
  %v563 = vmul.f32 %v476, %v505
  %v564 = vmul.f32 %v477, %v506
  %v565 = vmul.f32 %v476, %v507
  %v566 = vmul.f32 %v477, %v508
  %v567 = vmul.f32 %v476, %v509
  %v568 = vmul.f32 %v477, %v510
  %v569 = vmul.f32 %v478, %v511
  %v570 = vmul.f32 %v479, %v512
  %v571 = vmul.f32 %v478, %v513
  %v572 = vmul.f32 %v479, %v514
  %v573 = vmul.f32 %v478, %v515
  %v574 = vmul.f32 %v479, %v516
  %v575 = vadd.f32 %v557, %v563
  %v576 = vadd.f32 %v575, %v569
  %v577 = vadd.f32 %v558, %v564
  %v578 = vadd.f32 %v577, %v570
  %v579 = vadd.f32 %v559, %v565
  %v580 = vadd.f32 %v579, %v571
  %v581 = vadd.f32 %v560, %v566
  %v582 = vadd.f32 %v581, %v572
  %v583 = vadd.f32 %v561, %v567
  %v584 = vadd.f32 %v583, %v573
  %v585 = vadd.f32 %v562, %v568
  %v586 = vadd.f32 %v585, %v574
  %v587 = vmul.f32 %v437, %v544
  %v588 = vmul.f32 %v438, %v546
  %v589 = vadd.f32 %v587, %v555
  %v590 = vadd.f32 %v588, %v556
  %v591 = vmul.f32 %v451, %v544
  %v592 = vmul.f32 %v452, %v546
  %v593 = vmul.f32 %v453, %v544
  %v594 = vmul.f32 %v454, %v546
  %v595 = vmul.f32 %v455, %v544
  %v596 = vmul.f32 %v456, %v546
  %v597 = vmul.f32 %v555, %v576
  %v598 = vmul.f32 %v556, %v578
  %v599 = vmul.f32 %v555, %v580
  %v600 = vmul.f32 %v556, %v582
  %v601 = vmul.f32 %v555, %v584
  %v602 = vmul.f32 %v556, %v586
  %v603 = vadd.f32 %v591, %v597
  %v604 = vadd.f32 %v592, %v598
  %v605 = vadd.f32 %v593, %v599
  %v606 = vadd.f32 %v594, %v600
  %v607 = vadd.f32 %v595, %v601
  %v608 = vadd.f32 %v596, %v602
  %v609 = vsub.f32 1.0, %v530
  %v610 = vsub.f32 1.0, %v532
  %v611 = vmul.f32 %v459, %v609
  %v612 = vmul.f32 %v460, %v610
  %v613 = vsub.f32 1e-10, %v537
  %v614 = vsub.f32 1e-10, %v538
  %v615 = vmul.f32 %v613, 10000.0
  %v616 = vmul.f32 %v614, 10000.0
  %v617 = vmul.f32 %v615, 1.442695
  %v618 = vpow.pop %v617
  %v619 = vmul.f32 %v616, 1.442695
  %v620 = vpow.pop %v619
  %v621 = vmax.f32 %v618, 1e-10
  %v622 = vmax.f32 %v620, 1e-10
  %v623 = vadd.f32 %v589, %v621
  %v624 = vadd.f32 %v590, %v622
  %v625 = vrcp.pop %v623
  %v626 = vrcp.pop %v624
  %v627 = vadd.f32 %v603, %v621
  %v628 = vadd.f32 %v604, %v622
  %v629 = vadd.f32 %v605, %v621
  %v630 = vadd.f32 %v606, %v622
  %v631 = vadd.f32 %v607, %v621
  %v632 = vadd.f32 %v608, %v622
  %v633 = vmul.f32 %v627, %v625
  %v634 = vmul.f32 %v628, %v626
  %v635 = vmul.f32 %v629, %v625
  %v636 = vmul.f32 %v630, %v626
  %v637 = vmul.f32 %v631, %v625
  %v638 = vmul.f32 %v632, %v626
  %639 = vst [vmem:[%s4] sm:$0xff] %v633
  %640 = vst [vmem:[%s4 + $0x8] sm:$0xff] %v634
  %s641 = scalar_lea.vmem %s4, 16
  %642 = vst [vmem:[%s641] sm:$0xff] %v635
  %643 = vst [vmem:[%s641 + $0x8] sm:$0xff] %v636
  %s644 = scalar_lea.vmem %s4, 32
  %645 = vst [vmem:[%s644] sm:$0xff] %v637
  %646 = vst [vmem:[%s644 + $0x8] sm:$0xff] %v638
  %v647 = vsub.f32 1.0, %v611
  %v648 = vsub.f32 1.0, %v612
  %s649 = scalar_lea.vmem %s4, 48
  %650 = vst [vmem:[%s649] sm:$0xff] %v647
  %651 = vst [vmem:[%s649 + $0x8] sm:$0xff] %v648
  // Predicated region
  $region18: #{clean_shader.1} parent=0 // pred_check
    _
  $region19: #{clean_shader.1} parent=0 // pred_check_branch
    %653 = sbr.rel (0) target = $region21
  $region20: #{clean_shader.1} parent=0 // pred_region
    _
  $region21: #{clean_shader.1} parent=0 // pred_fallthru
    _
  // Predicated region
  $region22: #{clean_shader.1} parent=0 // pred_check
    _
  $region23: #{clean_shader.1} parent=0 // pred_check_branch
    %655 = sbr.rel (0) target = $region25
  $region24: #{clean_shader.1} parent=0 // pred_region
    _
  $region25: #{clean_shader.1} parent=0 // pred_fallthru
    _

</llo_original>
